<compile_context>
chip_gen: v5e
topology: v5e:2x2
jax: 0.10.0
libtpu: 0.0.40
codegen_flags: <defaults>
</compile_context>

<pallas_src>
import functools
import math

import jax
import jax.numpy as jnp
import numpy as np
from jax.experimental import pallas as pl
from jax.experimental.pallas import tpu as pltpu


def _round_up(x, m):
    return ((x + m - 1) // m) * m


def _attn_kernel(vl_ref, q_ref, k_ref, v_ref, o_ref, *, scale, apply_mask):
    # vl_ref: (Bb, 1, 1) or (Bb, tq, 1) int32 valid lengths
    # q_ref : (Bb, tq,  d_p)   k_ref: (Bb, Tk_p, d_p)
    # v_ref : (Bb, Tk_p, dv_p) o_ref: (Bb, tq,  dv_p)

    # Fold 1/sqrt(d) into the small Q tile (native dtype, MXU-friendly).
    q = q_ref[...] * jnp.asarray(scale, dtype=q_ref.dtype)
    k = k_ref[...]

    # scores = (Q * scale) @ K^T  -> (Bb, tq, Tk_p), f32 accumulation on MXU.
    scores = jnp.einsum("bqd,bkd->bqk", q, k,
                        preferred_element_type=jnp.float32)

    if apply_mask:
        vl = vl_ref[...]                              # (Bb,1,1) or (Bb,tq,1)
        col = jax.lax.broadcasted_iota(
            jnp.int32, (vl.shape[0], 1, scores.shape[-1]), 2)
        mask = col < vl                               # broadcasts over tq
        scores = jnp.where(mask, scores, jnp.float32(-1e6))

    # Softmax over the key axis.
    m = jnp.max(scores, axis=-1, keepdims=True)
    e = jnp.exp(scores - m)
    denom = jnp.sum(e, axis=-1, keepdims=True)
    weights = e * pl.reciprocal(denom, approx=True)

    # Cast weights down to V's dtype (bf16 path stays bf16 on the MXU).
    out = jnp.einsum("bqk,bkv->bqv", weights.astype(v_ref.dtype), v_ref[...],
                     preferred_element_type=jnp.float32)
    o_ref[...] = out.astype(o_ref.dtype)


def _choose_batch_block(B, tq, tk_p, d_p, dv_p, in_itemsize):
    """Largest divisor of B whose per-step footprint stays under a VMEM budget."""
    budget = 8 * 1024 * 1024
    best = 1
    for bb in range(1, B + 1):
        if B % bb:
            continue
        temps = bb * tq * tk_p * 4 * 3 + bb * tq * dv_p * 4
        tiles = 2 * bb * (tq * d_p + tk_p * d_p + tk_p * dv_p
                          + tq * dv_p) * in_itemsize
        if temps + tiles <= budget:
            best = bb
    return best


def dot_product_attention(queries, keys, values, valid_lens=None):
    """Pallas implementation of d2l DotProductAttention.forward (eval mode)."""
    B, Tq, d = queries.shape
    Bk, Tkv, dk = keys.shape
    Bv, Tkv_v, dv = values.shape
    assert (Bk, dk) == (B, d) and (Bv, Tkv_v) == (B, Tkv)

    out_dtype = queries.dtype
    scale = 1.0 / math.sqrt(d)

    # --- lane-dense padding (multiples of 128 on d / dv / Tkv) ----------------
    d_p = _round_up(max(d, 1), 128)
    dv_p = _round_up(max(dv, 1), 128)
    tk_p = _round_up(max(Tkv, 1), 128)

    # Tq tiling: single block for short sequences, 256-wide tiles for long ones.
    if Tq <= 256:
        tq = _round_up(max(Tq, 1), 8)
        tq_p = tq
    else:
        tq = 256
        tq_p = _round_up(Tq, tq)

    # --- valid-length handling (None / 1-D per-batch / 2-D per-query) --------
    apply_mask = not (valid_lens is None and tk_p == Tkv)
    per_query = valid_lens is not None and valid_lens.ndim == 2

    if valid_lens is None:
        vl = jnp.full((B, 1, 1), Tkv, dtype=jnp.int32)
    elif per_query:
        assert valid_lens.shape == (B, Tq)
        vl = jnp.minimum(valid_lens.astype(jnp.int32), Tkv).reshape(B, Tq, 1)
        vl = jnp.pad(vl, ((0, 0), (0, tq_p - Tq), (0, 0)))
    else:
        vl = jnp.minimum(valid_lens.astype(jnp.int32), Tkv).reshape(B, 1, 1)

    q_p = jnp.pad(queries, ((0, 0), (0, tq_p - Tq), (0, d_p - d)))
    k_p = jnp.pad(keys, ((0, 0), (0, tk_p - Tkv), (0, d_p - d)))
    v_p = jnp.pad(values, ((0, 0), (0, tk_p - Tkv), (0, dv_p - dv)))

    in_itemsize = jnp.dtype(queries.dtype).itemsize
    bb = _choose_batch_block(B, tq, tk_p, d_p, dv_p, in_itemsize)

    grid = (B // bb, tq_p // tq)

    # VMEM budget: double-buffered tiles + f32 temporaries, with headroom.
    tile_bytes = bb * (tq * d_p + tk_p * d_p + tk_p * dv_p) * in_itemsize \
        + bb * tq * dv_p * jnp.dtype(out_dtype).itemsize + bb * tq * 4
    temp_bytes = bb * tq * tk_p * 4 * 3 + bb * tq * dv_p * 4
    vmem_limit = int(min(64 << 20, max(32 << 20,
                                       int(1.5 * (2 * tile_bytes + temp_bytes)))))

    if per_query:
        vl_spec = pl.BlockSpec((bb, tq, 1), lambda b, q: (b, q, 0))
    else:
        vl_spec = pl.BlockSpec((bb, 1, 1), lambda b, q: (b, 0, 0))

    kernel = functools.partial(_attn_kernel, scale=scale, apply_mask=apply_mask)

    grid_spec = pltpu.PrefetchScalarGridSpec(
        num_scalar_prefetch=0,
        grid=grid,
        in_specs=[
            vl_spec,                                                 # valid lens
            pl.BlockSpec((bb, tq, d_p), lambda b, q: (b, q, 0)),     # Q
            pl.BlockSpec((bb, tk_p, d_p), lambda b, q: (b, 0, 0)),   # K
            pl.BlockSpec((bb, tk_p, dv_p), lambda b, q: (b, 0, 0)),  # V
        ],
        out_specs=pl.BlockSpec((bb, tq, dv_p), lambda b, q: (b, q, 0)),
    )

    out_p = pl.pallas_call(
        kernel,
        out_shape=jax.ShapeDtypeStruct((B, tq_p, dv_p), out_dtype),
        grid_spec=grid_spec,
        compiler_params=pltpu.CompilerParams(
            dimension_semantics=("parallel", "parallel"),
            vmem_limit_bytes=vmem_limit,
        ),
    )(vl, q_p, k_p, v_p)

    # Strip padding.
    return out_p[:, :Tq, :dv]


def _reference(queries, keys, values, valid_lens):
    d = queries.shape[-1]
    scores = jnp.einsum("bqd,bkd->bqk", queries.astype(jnp.float32),
                        keys.astype(jnp.float32)) / math.sqrt(d)
    col = jnp.arange(scores.shape[-1])[None, None, :]
    if valid_lens is None:
        vl = jnp.full((queries.shape[0], 1, 1), keys.shape[1], jnp.int32)
    elif valid_lens.ndim == 1:
        vl = valid_lens[:, None, None]
    else:
        vl = valid_lens[:, :, None]
    mask = col < vl
    scores = jnp.where(mask, scores, -1e6)
    w = jax.nn.softmax(scores, axis=-1)
    return jnp.einsum("bqk,bkv->bqv", w, values.astype(jnp.float32))


if __name__ == "__main__":
    key = jax.random.PRNGKey(0)

    # Case 1: canonical d2l example shapes, 1-D valid_lens.
    kq, kk, kv = jax.random.split(key, 3)
    B, Tq, Tkv, d, dv = 2, 1, 10, 2, 4
    queries = jax.random.normal(kq, (B, Tq, d), dtype=jnp.float32)
    keys = jax.random.normal(kk, (B, Tkv, d), dtype=jnp.float32)
    values = jax.random.normal(kv, (B, Tkv, dv), dtype=jnp.float32)
    valid_lens = jnp.array([2, 6], dtype=jnp.int32)

    out = jax.block_until_ready(
        dot_product_attention(queries, keys, values, valid_lens))
    ref = _reference(queries, keys, values, valid_lens)
    assert out.shape == (B, Tq, dv)
    np.testing.assert_allclose(np.asarray(out), np.asarray(ref),
                               rtol=2e-3, atol=2e-3)

    # Case 2: exercises Tq tiling, padding of d/dv/Tkv; 1-D / None / 2-D lens.
    kq2, kk2, kv2 = jax.random.split(jax.random.PRNGKey(1), 3)
    B2, Tq2, Tkv2, d2, dv2 = 2, 300, 257, 40, 24
    q2 = jax.random.normal(kq2, (B2, Tq2, d2), dtype=jnp.float32)
    k2 = jax.random.normal(kk2, (B2, Tkv2, d2), dtype=jnp.float32)
    v2 = jax.random.normal(kv2, (B2, Tkv2, dv2), dtype=jnp.float32)

    vl2 = jnp.array([100, 257], dtype=jnp.int32)
    out2 = jax.block_until_ready(dot_product_attention(q2, k2, v2, vl2))
    np.testing.assert_allclose(np.asarray(out2),
                               np.asarray(_reference(q2, k2, v2, vl2)),
                               rtol=2e-3, atol=2e-3)

    out3 = jax.block_until_ready(dot_product_attention(q2, k2, v2, None))
    np.testing.assert_allclose(np.asarray(out3),
                               np.asarray(_reference(q2, k2, v2, None)),
                               rtol=2e-3, atol=2e-3)

    vl4 = (jax.random.randint(jax.random.PRNGKey(2), (B2, Tq2), 1, Tkv2 + 1)
           .astype(jnp.int32))
    out4 = jax.block_until_ready(dot_product_attention(q2, k2, v2, vl4))
    np.testing.assert_allclose(np.asarray(out4),
                               np.asarray(_reference(q2, k2, v2, vl4)),
                               rtol=2e-3, atol=2e-3)

    print("KERNEL_OK")
</pallas_src>

<mosaic_0001>
module attributes {stable_mosaic.version = 11 : i64} {
  func.func @_attn_kernel(%arg0: i32, %arg1: i32, %arg2: memref<2x1x1xi32, #tpu.memory_space<vmem>>, %arg3: memref<2x8x128xf32, #tpu.memory_space<vmem>>, %arg4: memref<2x128x128xf32, #tpu.memory_space<vmem>>, %arg5: memref<2x128x128xf32, #tpu.memory_space<vmem>>, %arg6: memref<2x8x128xf32, #tpu.memory_space<vmem>>) attributes {dimension_semantics = [#tpu.dimension_semantics<parallel>, #tpu.dimension_semantics<parallel>], iteration_bounds = array<i64: 1, 1>, scalar_prefetch = 0 : i64, scratch_operands = 0 : i64, tpu.core_type = #tpu.core_type<tc>, window_params = [{transform_indices = @transform_0, window_bounds = array<i64: 2, 1, 1>}, {transform_indices = @transform_1, window_bounds = array<i64: 2, 8, 128>}, {transform_indices = @transform_2, window_bounds = array<i64: 2, 128, 128>}, {transform_indices = @transform_3, window_bounds = array<i64: 2, 128, 128>}, {transform_indices = @transform_4, window_bounds = array<i64: 2, 8, 128>}]} {
    %c0 = arith.constant 0 : index
    %c0_0 = arith.constant 0 : index
    %c0_1 = arith.constant 0 : index
    %0 = vector.load %arg3[%c0, %c0_0, %c0_1] : memref<2x8x128xf32, #tpu.memory_space<vmem>>, vector<2x8x128xf32>
    %cst = arith.constant 0.707106769 : f32
    %1 = vector.broadcast %cst : f32 to vector<2x8x128xf32>
    %2 = arith.mulf %0, %1 : vector<2x8x128xf32>
    %c0_2 = arith.constant 0 : index
    %c0_3 = arith.constant 0 : index
    %c0_4 = arith.constant 0 : index
    %3 = vector.load %arg4[%c0_2, %c0_3, %c0_4] : memref<2x128x128xf32, #tpu.memory_space<vmem>>, vector<2x128x128xf32>
    "tpu.trace_start"() <{level = 10 : i32, message = "bqd,bkd->bqk"}> : () -> ()
    %cst_5 = arith.constant dense<0.000000e+00> : vector<2x8x128xf32>
    %4 = tpu.matmul %2, %3, %cst_5 {dimension_numbers = #tpu.dot_dimension_numbers<[2], [2], [1], [1], [0, 0, 0, 1, 1, 1], [0], [0]>} : vector<2x8x128xf32>, vector<2x128x128xf32>, vector<2x8x128xf32> -> vector<2x8x128xf32>
    "tpu.trace_stop"() : () -> ()
    %c0_6 = arith.constant 0 : index
    %c0_7 = arith.constant 0 : index
    %c0_8 = arith.constant 0 : index
    %5 = vector.load %arg2[%c0_6, %c0_7, %c0_8] : memref<2x1x1xi32, #tpu.memory_space<vmem>>, vector<2x1x1xi32>
    %6 = tpu.iota {dimensions = array<i32: 2>} : vector<2x1x128xi32>
    %7 = vector.broadcast %5 : vector<2x1x1xi32> to vector<2x1x128xi32>
    %8 = arith.cmpi slt, %6, %7 : vector<2x1x128xi32>
    %cst_9 = arith.constant -1.000000e+06 : f32
    %9 = vector.shape_cast %8 : vector<2x1x128xi1> to vector<2x1x128xi1>
    %10 = vector.broadcast %9 : vector<2x1x128xi1> to vector<2x8x128xi1>
    %11 = vector.broadcast %cst_9 : f32 to vector<2x8x128xf32>
    %12 = arith.select %10, %4, %11 : vector<2x8x128xi1>, vector<2x8x128xf32>
    %cst_10 = arith.constant dense<0xFF800000> : vector<2x8xf32>
    %13 = vector.multi_reduction <maximumf>, %12, %cst_10 [2] : vector<2x8x128xf32> to vector<2x8xf32>
    %14 = vector.shape_cast %13 : vector<2x8xf32> to vector<2x8x1xf32>
    %15 = vector.broadcast %14 : vector<2x8x1xf32> to vector<2x8x128xf32>
    %16 = arith.subf %12, %15 : vector<2x8x128xf32>
    %17 = math.exp %16 : vector<2x8x128xf32>
    %cst_11 = arith.constant dense<0.000000e+00> : vector<2x8xf32>
    %18 = vector.multi_reduction <add>, %17, %cst_11 [2] : vector<2x8x128xf32> to vector<2x8xf32>
    %19 = vector.shape_cast %18 : vector<2x8xf32> to vector<2x8x1xf32>
    %20 = tpu.reciprocal %19 {approx = true} : vector<2x8x1xf32> -> vector<2x8x1xf32>
    %21 = vector.broadcast %20 : vector<2x8x1xf32> to vector<2x8x128xf32>
    %22 = arith.mulf %17, %21 : vector<2x8x128xf32>
    %c0_12 = arith.constant 0 : index
    %c0_13 = arith.constant 0 : index
    %c0_14 = arith.constant 0 : index
    %23 = vector.load %arg5[%c0_12, %c0_13, %c0_14] : memref<2x128x128xf32, #tpu.memory_space<vmem>>, vector<2x128x128xf32>
    "tpu.trace_start"() <{level = 10 : i32, message = "bqk,bkv->bqv"}> : () -> ()
    %cst_15 = arith.constant dense<0.000000e+00> : vector<2x8x128xf32>
    %24 = tpu.matmul %22, %23, %cst_15 {dimension_numbers = #tpu.dot_dimension_numbers<[2], [1], [1], [2], [0, 0, 0, 1, 1, 2], [0], [0]>} : vector<2x8x128xf32>, vector<2x128x128xf32>, vector<2x8x128xf32> -> vector<2x8x128xf32>
    "tpu.trace_stop"() : () -> ()
    %c0_16 = arith.constant 0 : index
    %c0_17 = arith.constant 0 : index
    %c0_18 = arith.constant 0 : index
    %25 = vector.load %arg6[%c0_16, %c0_17, %c0_18] : memref<2x8x128xf32, #tpu.memory_space<vmem>>, vector<2x8x128xf32>
    tpu.vector_store %arg6[%c0_16, %c0_17, %c0_18], %24 {strides = array<i32>} : memref<2x8x128xf32, #tpu.memory_space<vmem>>, vector<2x8x128xf32>,
    return
  }
  func.func @transform_0(%arg0: i32, %arg1: i32) -> (i32, i32, i32) {
    %c0_i32 = arith.constant 0 : i32
    %c0_i32_0 = arith.constant 0 : i32
    %c0_i32_1 = arith.constant 0 : i32
    return %arg0, %c0_i32, %c0_i32_0 : i32, i32, i32
  }
  func.func @transform_1(%arg0: i32, %arg1: i32) -> (i32, i32, i32) {
    %c0_i32 = arith.constant 0 : i32
    %c0_i32_0 = arith.constant 0 : i32
    return %arg0, %arg1, %c0_i32 : i32, i32, i32
  }
  func.func @transform_2(%arg0: i32, %arg1: i32) -> (i32, i32, i32) {
    %c0_i32 = arith.constant 0 : i32
    %c0_i32_0 = arith.constant 0 : i32
    %c0_i32_1 = arith.constant 0 : i32
    return %arg0, %c0_i32, %c0_i32_0 : i32, i32, i32
  }
  func.func @transform_3(%arg0: i32, %arg1: i32) -> (i32, i32, i32) {
    %c0_i32 = arith.constant 0 : i32
    %c0_i32_0 = arith.constant 0 : i32
    %c0_i32_1 = arith.constant 0 : i32
    return %arg0, %c0_i32, %c0_i32_0 : i32, i32, i32
  }
  func.func @transform_4(%arg0: i32, %arg1: i32) -> (i32, i32, i32) {
    %c0_i32 = arith.constant 0 : i32
    %c0_i32_0 = arith.constant 0 : i32
    return %arg0, %arg1, %c0_i32 : i32, i32, i32
  }
}

</mosaic_0001>

<llo_original>
// kernel: tpu_custom_call.1
$region0: #{tpu_custom_call.1}
  #allocation0 [shape = 'u32[]', space=smem, size = 0x4, offset = 0x4, fixed_abs, tag = 'smem constant byte address 0x4 - core index']
  #allocation1 [shape = 'u32[72,128]{1,0:T(1,128)}', space=vmem, size = 0x9000, scoped, tag = 'internal scratch']
  %s0 = inlined_call_operand.vmem [shape: s32[2,1,1], index: 0, kind: input, shape index: {}]
  %s1 = inlined_call_operand.hbm [shape: f32[2,8,128], index: 1, kind: input, shape index: {}]
  %s2 = inlined_call_operand.hbm [shape: f32[2,128,128], index: 2, kind: input, shape index: {}]
  %s3 = inlined_call_operand.hbm [shape: f32[2,128,128], index: 3, kind: input, shape index: {}]
  %s4 = inlined_call_operand.hbm [shape: f32[2,8,128], index: 4, kind: output, shape index: {}]
  %s5 = sld [smem:[#allocation0]]
  $region38: #{tpu_custom_call.1} parent=0
    _
  %s7 = ssub.s32 1, %s5
  %s8 = scalar_select 0, %s7, %s5
  $region1: #{tpu_custom_call.1} parent=0
    #allocation2 [shape = 'u8[8192]{0}', space=vmem, size = 0x2000, scoped, tag = 'input window, operand 1, single buffered']
    #allocation3 [shape = 's32[1]{0}', space=sflag, size = 0x4, scoped, tag = 'scoped memory for tpu_custom_call.1']
    #allocation4 [shape = 's32[1]{0}', space=sflag, size = 0x4, scoped, tag = 'scoped memory for tpu_custom_call.1']
    #allocation5 [shape = 'u8[131072]{0}', space=vmem, size = 0x20000, scoped, tag = 'input window, operand 2, single buffered']
    #allocation6 [shape = 's32[1]{0}', space=sflag, size = 0x4, scoped, tag = 'scoped memory for tpu_custom_call.1']
    #allocation7 [shape = 'u8[131072]{0}', space=vmem, size = 0x20000, scoped, tag = 'input window, operand 3, single buffered']
    #allocation8 [shape = 'u8[8192]{0}', space=vmem, size = 0x2000, scoped, tag = 'output window, operand 0, single buffered']
    %9 = vsyncpa [#allocation3], 0
    %10 = vsyncpa [#allocation6], 0
    %11 = vsyncpa [#allocation4], 0
    // Predicated region
    $region2: #{tpu_custom_call.1} parent=1 // pred_check
      _
    $region3: #{tpu_custom_call.1} parent=1 // pred_check_branch
      %13 = sbr.rel (0) target = $region5
    $region4: #{tpu_custom_call.1} parent=1 // pred_region
      _
    $region5: #{tpu_custom_call.1} parent=1 // pred_fallthru
      _
    // Predicated region
    $region6: #{tpu_custom_call.1} parent=1 // pred_check
      _
    $region7: #{tpu_custom_call.1} parent=1 // pred_check_branch
      %15 = sbr.rel (0) target = $region9
    $region8: #{tpu_custom_call.1} parent=1 // pred_region
      %17 = vsyncadd [#allocation3], 0
      %s18 = sshll.u32 %s1, 4
      %s19 = int_to_ptr.hbm [resolvable:$true] %s18
      %s20 = sshll.u32 [#allocation2], 4
      %s21 = int_to_ptr.vmem [resolvable:$true] %s20
      %26 = dma.hbm_to_vmem [thread:$0]  %s19, 256, %s21, [#allocation3], 128, 128, 8
    $region9: #{tpu_custom_call.1} parent=1 // pred_fallthru
      _
    // Predicated region
    $region10: #{tpu_custom_call.1} parent=1 // pred_check
      _
    $region11: #{tpu_custom_call.1} parent=1 // pred_check_branch
      %28 = sbr.rel (0) target = $region13
    $region12: #{tpu_custom_call.1} parent=1 // pred_region
      %30 = vsyncadd [#allocation6], 0
      %s31 = sshll.u32 %s2, 4
      %s32 = int_to_ptr.hbm [resolvable:$true] %s31
      %s33 = sshll.u32 [#allocation5], 4
      %s34 = int_to_ptr.vmem [resolvable:$true] %s33
      %39 = dma.hbm_to_vmem [thread:$0]  %s32, 4096, %s34, [#allocation6], 128, 128, 8
    $region13: #{tpu_custom_call.1} parent=1 // pred_fallthru
      _
    // Predicated region
    $region14: #{tpu_custom_call.1} parent=1 // pred_check
      _
    $region15: #{tpu_custom_call.1} parent=1 // pred_check_branch
      %41 = sbr.rel (0) target = $region17
    $region16: #{tpu_custom_call.1} parent=1 // pred_region
      %43 = vsyncadd [#allocation6], 0
      %s44 = sshll.u32 %s3, 4
      %s45 = int_to_ptr.hbm [resolvable:$true] %s44
      %s46 = sshll.u32 [#allocation7], 4
      %s47 = int_to_ptr.vmem [resolvable:$true] %s46
      %52 = dma.hbm_to_vmem [thread:$0]  %s45, 4096, %s47, [#allocation6], 128, 128, 8
    $region17: #{tpu_custom_call.1} parent=1 // pred_fallthru
      _
    // Predicated region
    $region18: #{tpu_custom_call.1} parent=1 // pred_check
      _
    $region19: #{tpu_custom_call.1} parent=1 // pred_check_branch
      %54 = sbr.rel (0) target = $region21
    $region20: #{tpu_custom_call.1} parent=1 // pred_region
      %56 = dma.done [#allocation3], 256
    $region21: #{tpu_custom_call.1} parent=1 // pred_fallthru
      _
    // Predicated region
    $region22: #{tpu_custom_call.1} parent=1 // pred_check
      _
    $region23: #{tpu_custom_call.1} parent=1 // pred_check_branch
      %58 = sbr.rel (0) target = $region25
    $region24: #{tpu_custom_call.1} parent=1 // pred_region
      %60 = dma.done [#allocation6], 4096
    $region25: #{tpu_custom_call.1} parent=1 // pred_fallthru
      _
    // Predicated region
    $region26: #{tpu_custom_call.1} parent=1 // pred_check
      _
    $region27: #{tpu_custom_call.1} parent=1 // pred_check_branch
      %62 = sbr.rel (0) target = $region29
    $region28: #{tpu_custom_call.1} parent=1 // pred_region
      %64 = dma.done [#allocation6], 4096
    $region29: #{tpu_custom_call.1} parent=1 // pred_fallthru
      _
    %v65 = vld [vmem:[#allocation2] sm:$0xff]
    %v66 = vld [vmem:[#allocation2 + $0x8] sm:$0xff]
    %v67 = vmul.f32 %v65, 0.70710677
    %v68 = vmul.f32 %v66, 0.70710677
    %v69 = vld [vmem:[#allocation5] sm:$0xff]
    %v70 = vld [vmem:[#allocation5 + $0x8] sm:$0xff]
    %v71 = vld [vmem:[#allocation5 + $0x10] sm:$0xff]
    %v72 = vld [vmem:[#allocation5 + $0x18] sm:$0xff]
    %v73 = vld [vmem:[#allocation5 + $0x20] sm:$0xff]
    %v74 = vld [vmem:[#allocation5 + $0x28] sm:$0xff]
    %v75 = vld [vmem:[#allocation5 + $0x30] sm:$0xff]
    %v76 = vld [vmem:[#allocation5 + $0x38] sm:$0xff]
    %v77 = vld [vmem:[#allocation5 + $0x40] sm:$0xff]
    %v78 = vld [vmem:[#allocation5 + $0x48] sm:$0xff]
    %v79 = vld [vmem:[#allocation5 + $0x50] sm:$0xff]
    %v80 = vld [vmem:[#allocation5 + $0x58] sm:$0xff]
    %v81 = vld [vmem:[#allocation5 + $0x60] sm:$0xff]
    %v82 = vld [vmem:[#allocation5 + $0x68] sm:$0xff]
    %v83 = vld [vmem:[#allocation5 + $0x70] sm:$0xff]
    %v84 = vld [vmem:[#allocation5 + $0x78] sm:$0xff]
    %v85 = vld [vmem:[#allocation5 + $0x80] sm:$0xff]
    %v86 = vld [vmem:[#allocation5 + $0x88] sm:$0xff]
    %v87 = vld [vmem:[#allocation5 + $0x90] sm:$0xff]
    %v88 = vld [vmem:[#allocation5 + $0x98] sm:$0xff]
    %v89 = vld [vmem:[#allocation5 + $0xa0] sm:$0xff]
    %v90 = vld [vmem:[#allocation5 + $0xa8] sm:$0xff]
    %v91 = vld [vmem:[#allocation5 + $0xb0] sm:$0xff]
    %v92 = vld [vmem:[#allocation5 + $0xb8] sm:$0xff]
    %v93 = vld [vmem:[#allocation5 + $0xc0] sm:$0xff]
    %v94 = vld [vmem:[#allocation5 + $0xc8] sm:$0xff]
    %v95 = vld [vmem:[#allocation5 + $0xd0] sm:$0xff]
    %v96 = vld [vmem:[#allocation5 + $0xd8] sm:$0xff]
    %v97 = vld [vmem:[#allocation5 + $0xe0] sm:$0xff]
    %v98 = vld [vmem:[#allocation5 + $0xe8] sm:$0xff]
    %v99 = vld [vmem:[#allocation5 + $0xf0] sm:$0xff]
    %v100 = vld [vmem:[#allocation5 + $0xf8] sm:$0xff]
    %101 = vmatpush.xpose.msra.mxu0 %v84
    %102 = vmatpush.xpose.msra.mxu0 %v83
    %103 = vmatpush.xpose.msra.mxu0 %v82
    %104 = vmatpush.xpose.msra.mxu0 %v81
    %105 = vmatpush.xpose.msra.mxu0 %v80
    %106 = vmatpush.xpose.msra.mxu0 %v79
    %107 = vmatpush.xpose.msra.mxu0 %v78
    %108 = vmatpush.xpose.msra.mxu0 %v77
    %109 = vmatpush.xpose.msra.mxu0 %v76
    %110 = vmatpush.xpose.msra.mxu0 %v75
    %111 = vmatpush.xpose.msra.mxu0 %v74
    %112 = vmatpush.xpose.msra.mxu0 %v73
    %113 = vmatpush.xpose.msra.mxu0 %v72
    %114 = vmatpush.xpose.msra.mxu0 %v71
    %115 = vmatpush.xpose.msra.mxu0 %v70
    %116 = vmatpush.xpose.msra.mxu0 %v69
    %117 = vmatmul.f32.gmra.mxu0 %v67
    %v118 = vpop.f32.mrf.mxu0
    %v119 = vadd.f32 0.0, %v118
    %120 = vdwg.mxu0
    %121 = vmatpush.xpose.msra.mxu0 %v100
    %122 = vmatpush.xpose.msra.mxu0 %v99
    %123 = vmatpush.xpose.msra.mxu0 %v98
    %124 = vmatpush.xpose.msra.mxu0 %v97
    %125 = vmatpush.xpose.msra.mxu0 %v96
    %126 = vmatpush.xpose.msra.mxu0 %v95
    %127 = vmatpush.xpose.msra.mxu0 %v94
    %128 = vmatpush.xpose.msra.mxu0 %v93
    %129 = vmatpush.xpose.msra.mxu0 %v92
    %130 = vmatpush.xpose.msra.mxu0 %v91
    %131 = vmatpush.xpose.msra.mxu0 %v90
    %132 = vmatpush.xpose.msra.mxu0 %v89
    %133 = vmatpush.xpose.msra.mxu0 %v88
    %134 = vmatpush.xpose.msra.mxu0 %v87
    %135 = vmatpush.xpose.msra.mxu0 %v86
    %136 = vmatpush.xpose.msra.mxu0 %v85
    %137 = vmatmul.f32.gmra.mxu0 %v68
    %v138 = vpop.f32.mrf.mxu0
    %v139 = vadd.f32 0.0, %v138
    %140 = vdwg.mxu0
    %v141 = vld [vmem:[%s0] sm:$0x1]
    %v142 = vld [vmem:[%s0 + $0x1] sm:$0x1]
    %v143 = vlaneseq
    %v144 = vand.u32 %v143, 127
    %145 = vset.pattern.permute.xlu0 0
    %146 = vperm.xlu0 %145, %v141
    %v147 = vpop.permute.xlu0 %146
    %v148 = vperm.slane %v147, 0
    %149 = vset.pattern.permute.xlu0 0
    %150 = vperm.xlu0 %149, %v142
    %v151 = vpop.permute.xlu0 %150
    %v152 = vperm.slane %v151, 0
    %vm153 = vcmp.lt.s32.totalorder %v144, %v148
    %vm154 = vcmp.lt.s32.totalorder %v144, %v152
    %v155 = vsel %vm153, 1, 0
    %v156 = vsel %vm154, 1, 0
    %vm157 = vcmp.eq.s32.totalorder %v155, 1
    %vm158 = vcmp.eq.s32.totalorder %v156, 1
    %v159 = vsel %vm157, %v119, -1000000.0
    %v160 = vsel %vm158, %v139, -1000000.0
    %161 = vmax.xlane.f32.xlu0 %v159
    %v162 = vpop.xlane.xlu0 %161
    %163 = vmax.xlane.f32.xlu0 %v160
    %v164 = vpop.xlane.xlu0 %163
    %v165 = vsub.f32 %v159, %v162
    %v166 = vsub.f32 %v160, %v164
    %v167 = vmul.f32 %v165, 1.442695
    %v168 = vpow.pop %v167
    %v169 = vmul.f32 %v166, 1.442695
    %v170 = vpow.pop %v169
    %171 = vadd.xlane.f32.xlu0 %v168
    %v172 = vpop.xlane.xlu0 %171
    %173 = vadd.xlane.f32.xlu0 %v170
    %v174 = vpop.xlane.xlu0 %173
    %v175 = vrcp.pop %v172
    %v176 = vrcp.pop %v174
    %v177 = vmul.f32 %v168, %v175
    %v178 = vmul.f32 %v170, %v176
    %v179 = vld [vmem:[#allocation7] sm:$0xff]
    %v180 = vld [vmem:[#allocation7 + $0x8] sm:$0xff]
    %v181 = vld [vmem:[#allocation7 + $0x10] sm:$0xff]
    %v182 = vld [vmem:[#allocation7 + $0x18] sm:$0xff]
    %v183 = vld [vmem:[#allocation7 + $0x20] sm:$0xff]
    %v184 = vld [vmem:[#allocation7 + $0x28] sm:$0xff]
    %v185 = vld [vmem:[#allocation7 + $0x30] sm:$0xff]
    %v186 = vld [vmem:[#allocation7 + $0x38] sm:$0xff]
    %v187 = vld [vmem:[#allocation7 + $0x40] sm:$0xff]
    %v188 = vld [vmem:[#allocation7 + $0x48] sm:$0xff]
    %v189 = vld [vmem:[#allocation7 + $0x50] sm:$0xff]
    %v190 = vld [vmem:[#allocation7 + $0x58] sm:$0xff]
    %v191 = vld [vmem:[#allocation7 + $0x60] sm:$0xff]
    %v192 = vld [vmem:[#allocation7 + $0x68] sm:$0xff]
    %v193 = vld [vmem:[#allocation7 + $0x70] sm:$0xff]
    %v194 = vld [vmem:[#allocation7 + $0x78] sm:$0xff]
    %v195 = vld [vmem:[#allocation7 + $0x80] sm:$0xff]
    %v196 = vld [vmem:[#allocation7 + $0x88] sm:$0xff]
    %v197 = vld [vmem:[#allocation7 + $0x90] sm:$0xff]
    %v198 = vld [vmem:[#allocation7 + $0x98] sm:$0xff]
    %v199 = vld [vmem:[#allocation7 + $0xa0] sm:$0xff]
    %v200 = vld [vmem:[#allocation7 + $0xa8] sm:$0xff]
    %v201 = vld [vmem:[#allocation7 + $0xb0] sm:$0xff]
    %v202 = vld [vmem:[#allocation7 + $0xb8] sm:$0xff]
    %v203 = vld [vmem:[#allocation7 + $0xc0] sm:$0xff]
    %v204 = vld [vmem:[#allocation7 + $0xc8] sm:$0xff]
    %v205 = vld [vmem:[#allocation7 + $0xd0] sm:$0xff]
    %v206 = vld [vmem:[#allocation7 + $0xd8] sm:$0xff]
    %v207 = vld [vmem:[#allocation7 + $0xe0] sm:$0xff]
    %v208 = vld [vmem:[#allocation7 + $0xe8] sm:$0xff]
    %v209 = vld [vmem:[#allocation7 + $0xf0] sm:$0xff]
    %v210 = vld [vmem:[#allocation7 + $0xf8] sm:$0xff]
    %211 = vmatpush.msra.mxu0 %v194
    %212 = vmatpush.msra.mxu0 %v193
    %213 = vmatpush.msra.mxu0 %v192
    %214 = vmatpush.msra.mxu0 %v191
    %215 = vmatpush.msra.mxu0 %v190
    %216 = vmatpush.msra.mxu0 %v189
    %217 = vmatpush.msra.mxu0 %v188
    %218 = vmatpush.msra.mxu0 %v187
    %219 = vmatpush.msra.mxu0 %v186
    %220 = vmatpush.msra.mxu0 %v185
    %221 = vmatpush.msra.mxu0 %v184
    %222 = vmatpush.msra.mxu0 %v183
    %223 = vmatpush.msra.mxu0 %v182
    %224 = vmatpush.msra.mxu0 %v181
    %225 = vmatpush.msra.mxu0 %v180
    %226 = vmatpush.msra.mxu0 %v179
    %227 = vmatmul.f32.gmra.mxu0 %v177
    %v228 = vpop.f32.mrf.mxu0
    %v229 = vadd.f32 0.0, %v228
    %230 = vdwg.mxu0
    %231 = vmatpush.msra.mxu0 %v210
    %232 = vmatpush.msra.mxu0 %v209
    %233 = vmatpush.msra.mxu0 %v208
    %234 = vmatpush.msra.mxu0 %v207
    %235 = vmatpush.msra.mxu0 %v206
    %236 = vmatpush.msra.mxu0 %v205
    %237 = vmatpush.msra.mxu0 %v204
    %238 = vmatpush.msra.mxu0 %v203
    %239 = vmatpush.msra.mxu0 %v202
    %240 = vmatpush.msra.mxu0 %v201
    %241 = vmatpush.msra.mxu0 %v200
    %242 = vmatpush.msra.mxu0 %v199
    %243 = vmatpush.msra.mxu0 %v198
    %244 = vmatpush.msra.mxu0 %v197
    %245 = vmatpush.msra.mxu0 %v196
    %246 = vmatpush.msra.mxu0 %v195
    %247 = vmatmul.f32.gmra.mxu0 %v178
    %v248 = vpop.f32.mrf.mxu0
    %v249 = vadd.f32 0.0, %v248
    %250 = vdwg.mxu0
    %251 = vst [vmem:[#allocation8] sm:$0xff] %v229
    %252 = vst [vmem:[#allocation8 + $0x8] sm:$0xff] %v249
    // Predicated region
    $region30: #{tpu_custom_call.1} parent=1 // pred_check
      _
    $region31: #{tpu_custom_call.1} parent=1 // pred_check_branch
      %254 = sbr.rel (0) target = $region33
    $region32: #{tpu_custom_call.1} parent=1 // pred_region
      %256 = vsyncadd [#allocation4], 0
      %s257 = sshll.u32 [#allocation8], 4
      %s258 = int_to_ptr.vmem [resolvable:$true] %s257
      %s259 = sshll.u32 %s4, 4
      %s260 = int_to_ptr.hbm [resolvable:$true] %s259
      %265 = dma.vmem_to_hbm [thread:$0]  %s258, 256, %s260, [#allocation4], 128, 128, 8
    $region33: #{tpu_custom_call.1} parent=1 // pred_fallthru
      _
    // Predicated region
    $region34: #{tpu_custom_call.1} parent=1 // pred_check
      _
    $region35: #{tpu_custom_call.1} parent=1 // pred_check_branch
      %267 = sbr.rel (0) target = $region37
    $region36: #{tpu_custom_call.1} parent=1 // pred_region
      %269 = dma.done [#allocation4], 256
    $region37: #{tpu_custom_call.1} parent=1 // pred_fallthru
      _
    %270 = vsyncpa [#allocation3], 1
    %271 = vsyncpa [#allocation6], 1
    %272 = vsyncpa [#allocation4], 1

</llo_original>
